<compile_context>
chip_gen: v7x
topology: tpu7x:2x2x1
jax: 0.10.0
libtpu: 0.0.40
codegen_flags: <defaults>
</compile_context>

<pallas_src>
import functools

import jax
import jax.numpy as jnp
from jax.experimental import pallas as pl
from jax.experimental.pallas import tpu as pltpu

LANES = 128  # lane width; all channel dims are zero-padded to this for lane density


# ----------------------------- Pallas kernel -------------------------------- #
def _xasnet_kernel(x_ref, adj_ref, pa_ref, w_ref, b_ref, out_ref,
                   *, c_in, off_w1, off_w2o):
    """One grid step == one independent graph block.

    x_ref  : [N, c_in]      bf16  node features
    adj_ref: [N, N]         bf16  sym-normalized adjacency (self loops included)
    pa_ref : [B, N]         bf16  folded (mean_pool @ A_hat)
    w_ref  : [R, 128]       bf16  packed weights:   W0 | W1(pad 128x128) | W2@Wout(pad 128x128)
    b_ref  : [8, 128]       f32   packed biases:    b0 | b1 | (b2@Wout + bout)
    out_ref: [B, 128]       f32   lane-dense output slab (first num_targets cols valid)
    """
    f32 = jnp.float32
    bf16 = jnp.bfloat16

    x = x_ref[...]
    adj = adj_ref[...]
    pa = pa_ref[...]

    w0 = w_ref[0:c_in, :]                     # [c_in, 128]
    w1 = w_ref[off_w1:off_w1 + LANES, :]      # [128, 128]
    w2o = w_ref[off_w2o:off_w2o + LANES, :]   # [128, 128]  (= W2 @ Wout, zero padded)

    b0 = b_ref[0:1, :]
    b1 = b_ref[1:2, :]
    b2o = b_ref[2:3, :]                       # (= b2 @ Wout + bout, zero padded)

    # --- layer 0: A_hat @ (X W0) + b0, ReLU ---------------------------------- #
    h = jnp.dot(x, w0, preferred_element_type=f32).astype(bf16)
    h = jnp.dot(adj, h, preferred_element_type=f32) + b0
    h = jnp.maximum(h, 0.0)

    # --- layer 1: A_hat @ (H W1) + b1, ReLU ---------------------------------- #
    h = jnp.dot(h.astype(bf16), w1, preferred_element_type=f32).astype(bf16)
    h = jnp.dot(adj, h, preferred_element_type=f32) + b1
    h = jnp.maximum(h, 0.0)

    # --- fused tail: layer-2 propagation + mean pool + output Linear ---------- #
    #   out = ((pool @ A_hat) @ H1) @ (W2 @ Wout) + (b2 @ Wout + bout)
    g = jnp.dot(pa, h.astype(bf16), preferred_element_type=f32)          # [B, 128]
    out_ref[...] = jnp.dot(g.astype(bf16), w2o, preferred_element_type=f32) + b2o


# ------------------------------ Wrapper (plain JAX glue) --------------------- #
def _round_up(x, m):
    return (x + m - 1) // m * m


def _pack_params(w0, b0, w1, b1, w2, b2, wo, bo, compute_dtype):
    """Fold the tail and pack all parameters into two lane-dense buffers."""
    assert w0.shape[1] <= LANES and w1.shape[1] <= LANES and wo.shape[1] <= LANES
    c_in = w0.shape[0]

    # tail fusion (computed once, in f32, at trace time)
    w2o = w2.astype(jnp.float32) @ wo.astype(jnp.float32)            # [C1, T]
    b2o = b2.astype(jnp.float32) @ wo.astype(jnp.float32) + bo       # [1, T]

    r0 = _round_up(c_in, 16)          # keep bf16 sublane-tile alignment
    off_w1 = r0
    off_w2o = r0 + LANES
    total_rows = r0 + 2 * LANES

    w_pack = jnp.zeros((total_rows, LANES), compute_dtype)
    w_pack = w_pack.at[:w0.shape[0], :w0.shape[1]].set(w0.astype(compute_dtype))
    w_pack = w_pack.at[off_w1:off_w1 + w1.shape[0], :w1.shape[1]].set(w1.astype(compute_dtype))
    w_pack = w_pack.at[off_w2o:off_w2o + w2o.shape[0], :w2o.shape[1]].set(
        w2o.astype(compute_dtype))

    b_pack = jnp.zeros((8, LANES), jnp.float32)
    b_pack = b_pack.at[0, :b0.shape[1]].set(b0[0])
    b_pack = b_pack.at[1, :b1.shape[1]].set(b1[0])
    b_pack = b_pack.at[2, :b2o.shape[1]].set(b2o[0])
    return w_pack, b_pack, off_w1, off_w2o


def xasnet_forward(x, adj, pool, w0, b0, w1, b1, w2, b2, wo, bo,
                   compute_dtype=jnp.bfloat16):
    """Fused forward over G independent graph blocks.

    x    : [G, N, Cin] f32   adj : [G, N, N] f32   pool : [G, B, N] f32 (mean-pool
    rows, each summing to 1 — i.e. no empty graphs, required by the tail fusion).
    Returns [G, B, num_targets] f32.
    """
    G, N, c_in = x.shape
    B = pool.shape[1]
    num_targets = wo.shape[1]

    w_pack, b_pack, off_w1, off_w2o = _pack_params(
        w0, b0, w1, b1, w2, b2, wo, bo, compute_dtype)

    # fold pool @ A_hat once in the wrapper (tiny, f32)
    pa = jnp.matmul(pool, adj)                                       # [G, B, N]

    xc = x.astype(compute_dtype)
    adjc = adj.astype(compute_dtype)
    pac = pa.astype(compute_dtype)

    kernel = functools.partial(_xasnet_kernel,
                               c_in=c_in, off_w1=off_w1, off_w2o=off_w2o)

    out = pl.pallas_call(
        kernel,
        out_shape=jax.ShapeDtypeStruct((G, B, LANES), jnp.float32),
        grid=(G,),
        in_specs=[
            pl.BlockSpec((None, N, c_in), lambda g: (g, 0, 0)),      # per-block
            pl.BlockSpec((None, N, N), lambda g: (g, 0, 0)),         # per-block
            pl.BlockSpec((None, B, N), lambda g: (g, 0, 0)),         # per-block
            pl.BlockSpec(w_pack.shape, lambda g: (0, 0)),            # resident weights
            pl.BlockSpec(b_pack.shape, lambda g: (0, 0)),            # resident biases
        ],
        out_specs=pl.BlockSpec((None, B, LANES), lambda g: (g, 0, 0)),
        compiler_params=pltpu.CompilerParams(
            dimension_semantics=("parallel",)),                      # 2x on v7x megacore
    )(xc, adjc, pac, w_pack, b_pack)

    return out[:, :, :num_targets]


# ------------------------------- Graph utilities ----------------------------- #
def gcn_norm_dense(edge_index, num_nodes):
    """Dense sym-normalized adjacency with self loops (PyG gcn_norm semantics)."""
    src, dst = edge_index[0], edge_index[1]
    a = jnp.zeros((num_nodes, num_nodes), jnp.float32)
    a = a.at[dst, src].add(1.0)                      # A[i, j] = edge j -> i
    a = a + jnp.eye(num_nodes, dtype=jnp.float32)    # add self loops
    deg = a.sum(axis=1)
    dinv = jnp.where(deg > 0, 1.0 / jnp.sqrt(deg), 0.0)
    return a * dinv[:, None] * dinv[None, :]


def mean_pool_matrix(batch_seg, num_graphs):
    onehot = (batch_seg[None, :] == jnp.arange(num_graphs)[:, None]).astype(jnp.float32)
    counts = jnp.maximum(onehot.sum(axis=1, keepdims=True), 1.0)
    return onehot / counts


def kaiming_normal(key, fan_in, fan_out):
    # deterministic synthetic init (module uses kaiming/orthogonal; weights here
    # only need to be deterministic, not loaded from a checkpoint)
    return jax.random.normal(key, (fan_in, fan_out), jnp.float32) * jnp.sqrt(2.0 / fan_in)


# --------------------------------- Reference (f32) --------------------------- #
def reference_forward(x, adj, pool, w0, b0, w1, b1, w2, b2, wo, bo):
    h = jnp.maximum(adj @ (x @ w0) + b0, 0.0)
    h = jnp.maximum(adj @ (h @ w1) + b1, 0.0)
    h = adj @ (h @ w2) + b2
    p = pool @ h
    return p @ wo + bo


if __name__ == "__main__":
    # Small deterministic test: G graph blocks batched per pallas_call,
    # B graphs of N/2 nodes each inside every block.
    N = 32                       # nodes per graph block
    B = 2                        # graphs per block
    G = 4                        # graph blocks (one grid step each)
    in_channels = [16, 32, 32]
    out_channels = [32, 32, 64]
    num_targets = 24

    key = jax.random.PRNGKey(0)
    kx, k0, k1, k2, ko = jax.random.split(key, 5)

    # Node features for G independent graph blocks.
    x = jax.random.normal(kx, (G, N, in_channels[0]), jnp.float32)

    # Per-block ring graphs with different skip distances (deterministic topology).
    idx = jnp.arange(N)
    batch_seg = jnp.concatenate([jnp.zeros(N // 2, jnp.int32),
                                 jnp.ones(N - N // 2, jnp.int32)])
    pool_b = mean_pool_matrix(batch_seg, B)                  # [B, N]
    adjs, pools = [], []
    for g in range(G):
        skip = g + 1
        src = jnp.concatenate([idx, (idx + skip) % N])
        dst = jnp.concatenate([(idx + skip) % N, idx])
        edge_index = jnp.stack([src, dst])                   # [2, E]
        adjs.append(gcn_norm_dense(edge_index, N))
        pools.append(pool_b)
    adj = jnp.stack(adjs)                                    # [G, N, N]
    pool = jnp.stack(pools)                                  # [G, B, N]

    # Parameters (weights [C_in, C_out]; biases zero as in reset_parameters()).
    w0 = kaiming_normal(k0, in_channels[0], out_channels[0])
    w1 = kaiming_normal(k1, in_channels[1], out_channels[1])
    w2 = kaiming_normal(k2, in_channels[2], out_channels[2])
    wo = kaiming_normal(ko, out_channels[2], num_targets)
    b0 = jnp.zeros((1, out_channels[0]), jnp.float32)
    b1 = jnp.zeros((1, out_channels[1]), jnp.float32)
    b2 = jnp.zeros((1, out_channels[2]), jnp.float32)
    bo = jnp.zeros((1, num_targets), jnp.float32)

    out = xasnet_forward(x, adj, pool, w0, b0, w1, b1, w2, b2, wo, bo)
    out = jax.block_until_ready(out)

    ref = jax.vmap(reference_forward, in_axes=(0, 0, 0) + (None,) * 8)(
        x, adj, pool, w0, b0, w1, b1, w2, b2, wo, bo)

    assert out.shape == (G, B, num_targets)
    # bf16 matmul inputs with f32 accumulation -> loosened tolerance vs. pure-f32 reference.
    assert jnp.allclose(out, ref, atol=5e-2, rtol=5e-2), \
        float(jnp.max(jnp.abs(out - ref)))

    print("KERNEL_OK")
</pallas_src>

<mosaic_0001>
module attributes {stable_mosaic.version = 11 : i64} {
  func.func @_xasnet_kernel(%arg0: i32, %arg1: memref<1x32x16xbf16, #tpu.memory_space<vmem>>, %arg2: memref<1x32x32xbf16, #tpu.memory_space<vmem>>, %arg3: memref<1x2x32xbf16, #tpu.memory_space<vmem>>, %arg4: memref<272x128xbf16, #tpu.memory_space<vmem>>, %arg5: memref<8x128xf32, #tpu.memory_space<vmem>>, %arg6: memref<1x2x128xf32, #tpu.memory_space<vmem>>) attributes {dimension_semantics = [#tpu.dimension_semantics<parallel>], iteration_bounds = array<i64: 4>, scalar_prefetch = 0 : i64, scratch_operands = 0 : i64, tpu.core_type = #tpu.core_type<tc>, window_params = [{transform_indices = @transform_0, window_bounds = array<i64: 1, 32, 16>}, {transform_indices = @transform_1, window_bounds = array<i64: 1, 32, 32>}, {transform_indices = @transform_2, window_bounds = array<i64: 1, 2, 32>}, {pipeline_mode = #tpu.pipeline_mode<synchronous>, transform_indices = @transform_3, window_bounds = array<i64: 272, 128>}, {pipeline_mode = #tpu.pipeline_mode<synchronous>, transform_indices = @transform_4, window_bounds = array<i64: 8, 128>}, {transform_indices = @transform_5, window_bounds = array<i64: 1, 2, 128>}]} {
    %c0 = arith.constant 0 : index
    %c0_0 = arith.constant 0 : index
    %c0_1 = arith.constant 0 : index
    %0 = vector.load %arg1[%c0, %c0_0, %c0_1] : memref<1x32x16xbf16, #tpu.memory_space<vmem>>, vector<1x32x16xbf16>
    %1 = vector.shape_cast %0 : vector<1x32x16xbf16> to vector<32x16xbf16>
    %c0_2 = arith.constant 0 : index
    %c0_3 = arith.constant 0 : index
    %c0_4 = arith.constant 0 : index
    %2 = vector.load %arg2[%c0_2, %c0_3, %c0_4] : memref<1x32x32xbf16, #tpu.memory_space<vmem>>, vector<1x32x32xbf16>
    %3 = vector.shape_cast %2 : vector<1x32x32xbf16> to vector<32x32xbf16>
    %c0_5 = arith.constant 0 : index
    %c0_6 = arith.constant 0 : index
    %c0_7 = arith.constant 0 : index
    %4 = vector.load %arg3[%c0_5, %c0_6, %c0_7] : memref<1x2x32xbf16, #tpu.memory_space<vmem>>, vector<1x2x32xbf16>
    %5 = vector.shape_cast %4 : vector<1x2x32xbf16> to vector<2x32xbf16>
    %c0_8 = arith.constant 0 : index
    %c0_9 = arith.constant 0 : index
    %6 = vector.load %arg4[%c0_8, %c0_9] : memref<272x128xbf16, #tpu.memory_space<vmem>>, vector<16x128xbf16>
    %c16 = arith.constant 16 : index
    %c0_10 = arith.constant 0 : index
    %7 = vector.load %arg4[%c16, %c0_10] : memref<272x128xbf16, #tpu.memory_space<vmem>>, vector<128x128xbf16>
    %c144 = arith.constant 144 : index
    %c0_11 = arith.constant 0 : index
    %8 = vector.load %arg4[%c144, %c0_11] : memref<272x128xbf16, #tpu.memory_space<vmem>>, vector<128x128xbf16>
    %c0_12 = arith.constant 0 : index
    %c0_13 = arith.constant 0 : index
    %9 = vector.load %arg5[%c0_12, %c0_13] : memref<8x128xf32, #tpu.memory_space<vmem>>, vector<1x128xf32>
    %c1 = arith.constant 1 : index
    %c0_14 = arith.constant 0 : index
    %10 = vector.load %arg5[%c1, %c0_14] : memref<8x128xf32, #tpu.memory_space<vmem>>, vector<1x128xf32>
    %c2 = arith.constant 2 : index
    %c0_15 = arith.constant 0 : index
    %11 = vector.load %arg5[%c2, %c0_15] : memref<8x128xf32, #tpu.memory_space<vmem>>, vector<1x128xf32>
    %cst = arith.constant dense<0.000000e+00> : vector<32x128xf32>
    %12 = tpu.matmul %1, %6, %cst {dimension_numbers = #tpu.dot_dimension_numbers<[1], [0], [0], [1], [0, 0, 1, 1], [], []>} : vector<32x16xbf16>, vector<16x128xbf16>, vector<32x128xf32> -> vector<32x128xf32>
    %13 = arith.truncf %12 : vector<32x128xf32> to vector<32x128xbf16>
    %cst_16 = arith.constant dense<0.000000e+00> : vector<32x128xf32>
    %14 = tpu.matmul %3, %13, %cst_16 {dimension_numbers = #tpu.dot_dimension_numbers<[1], [0], [0], [1], [0, 0, 1, 1], [], []>} : vector<32x32xbf16>, vector<32x128xbf16>, vector<32x128xf32> -> vector<32x128xf32>
    %15 = vector.broadcast %9 : vector<1x128xf32> to vector<32x128xf32>
    %16 = arith.addf %14, %15 : vector<32x128xf32>
    %cst_17 = arith.constant 0.000000e+00 : f32
    %17 = vector.broadcast %cst_17 : f32 to vector<32x128xf32>
    %18 = arith.maximumf %16, %17 : vector<32x128xf32>
    %19 = arith.truncf %18 : vector<32x128xf32> to vector<32x128xbf16>
    %cst_18 = arith.constant dense<0.000000e+00> : vector<32x128xf32>
    %20 = tpu.matmul %19, %7, %cst_18 {dimension_numbers = #tpu.dot_dimension_numbers<[1], [0], [0], [1], [0, 0, 1, 1], [], []>} : vector<32x128xbf16>, vector<128x128xbf16>, vector<32x128xf32> -> vector<32x128xf32>
    %21 = arith.truncf %20 : vector<32x128xf32> to vector<32x128xbf16>
    %cst_19 = arith.constant dense<0.000000e+00> : vector<32x128xf32>
    %22 = tpu.matmul %3, %21, %cst_19 {dimension_numbers = #tpu.dot_dimension_numbers<[1], [0], [0], [1], [0, 0, 1, 1], [], []>} : vector<32x32xbf16>, vector<32x128xbf16>, vector<32x128xf32> -> vector<32x128xf32>
    %23 = vector.broadcast %10 : vector<1x128xf32> to vector<32x128xf32>
    %24 = arith.addf %22, %23 : vector<32x128xf32>
    %cst_20 = arith.constant 0.000000e+00 : f32
    %25 = vector.broadcast %cst_20 : f32 to vector<32x128xf32>
    %26 = arith.maximumf %24, %25 : vector<32x128xf32>
    %27 = arith.truncf %26 : vector<32x128xf32> to vector<32x128xbf16>
    %cst_21 = arith.constant dense<0.000000e+00> : vector<2x128xf32>
    %28 = tpu.matmul %5, %27, %cst_21 {dimension_numbers = #tpu.dot_dimension_numbers<[1], [0], [0], [1], [0, 0, 1, 1], [], []>} : vector<2x32xbf16>, vector<32x128xbf16>, vector<2x128xf32> -> vector<2x128xf32>
    %29 = arith.truncf %28 : vector<2x128xf32> to vector<2x128xbf16>
    %cst_22 = arith.constant dense<0.000000e+00> : vector<2x128xf32>
    %30 = tpu.matmul %29, %8, %cst_22 {dimension_numbers = #tpu.dot_dimension_numbers<[1], [0], [0], [1], [0, 0, 1, 1], [], []>} : vector<2x128xbf16>, vector<128x128xbf16>, vector<2x128xf32> -> vector<2x128xf32>
    %31 = vector.broadcast %11 : vector<1x128xf32> to vector<2x128xf32>
    %32 = arith.addf %30, %31 : vector<2x128xf32>
    %c0_23 = arith.constant 0 : index
    %c0_24 = arith.constant 0 : index
    %c0_25 = arith.constant 0 : index
    %33 = vector.load %arg6[%c0_23, %c0_24, %c0_25] : memref<1x2x128xf32, #tpu.memory_space<vmem>>, vector<1x2x128xf32>
    %34 = vector.shape_cast %33 : vector<1x2x128xf32> to vector<2x128xf32>
    %35 = vector.shape_cast %32 : vector<2x128xf32> to vector<1x2x128xf32>
    tpu.vector_store %arg6[%c0_23, %c0_24, %c0_25], %35 {strides = array<i32>} : memref<1x2x128xf32, #tpu.memory_space<vmem>>, vector<1x2x128xf32>,
    return
  }
  func.func @transform_0(%arg0: i32) -> (i32, i32, i32) {
    %c0_i32 = arith.constant 0 : i32
    %c0_i32_0 = arith.constant 0 : i32
    %c0_i32_1 = arith.constant 0 : i32
    return %arg0, %c0_i32, %c0_i32_0 : i32, i32, i32
  }
  func.func @transform_1(%arg0: i32) -> (i32, i32, i32) {
    %c0_i32 = arith.constant 0 : i32
    %c0_i32_0 = arith.constant 0 : i32
    %c0_i32_1 = arith.constant 0 : i32
    return %arg0, %c0_i32, %c0_i32_0 : i32, i32, i32
  }
  func.func @transform_2(%arg0: i32) -> (i32, i32, i32) {
    %c0_i32 = arith.constant 0 : i32
    %c0_i32_0 = arith.constant 0 : i32
    %c0_i32_1 = arith.constant 0 : i32
    return %arg0, %c0_i32, %c0_i32_0 : i32, i32, i32
  }
  func.func @transform_3(%arg0: i32) -> (i32, i32) {
    %c0_i32 = arith.constant 0 : i32
    %c0_i32_0 = arith.constant 0 : i32
    %c0_i32_1 = arith.constant 0 : i32
    return %c0_i32, %c0_i32_0 : i32, i32
  }
  func.func @transform_4(%arg0: i32) -> (i32, i32) {
    %c0_i32 = arith.constant 0 : i32
    %c0_i32_0 = arith.constant 0 : i32
    %c0_i32_1 = arith.constant 0 : i32
    return %c0_i32, %c0_i32_0 : i32, i32
  }
  func.func @transform_5(%arg0: i32) -> (i32, i32, i32) {
    %c0_i32 = arith.constant 0 : i32
    %c0_i32_0 = arith.constant 0 : i32
    %c0_i32_1 = arith.constant 0 : i32
    return %arg0, %c0_i32, %c0_i32_0 : i32, i32, i32
  }
}

</mosaic_0001>

<llo_original>
// kernel: tpu_custom_call.1
$region0: #{tpu_custom_call.1}
  #allocation0 [shape = 'u32[]', space=smem, size = 0x4, offset = 0x4, fixed_abs, tag = 'smem constant byte address 0x4 - core index']
  #allocation1 [shape = 'u32[144,128]{1,0:T(1,128)}', space=vmem, size = 0x12000, scoped, tag = 'internal scratch']
  %s0 = inlined_call_operand.vmem [shape: bf16[4,32,16], index: 0, kind: input, shape index: {}]
  %s1 = inlined_call_operand.vmem [shape: bf16[4,32,32], index: 1, kind: input, shape index: {}]
  %s2 = inlined_call_operand.vmem [shape: bf16[4,2,32], index: 2, kind: input, shape index: {}]
  %s3 = inlined_call_operand.hbm [shape: bf16[272,128], index: 3, kind: input, shape index: {}]
  %s4 = inlined_call_operand.vmem [shape: f32[8,128], index: 4, kind: input, shape index: {}]
  %s5 = inlined_call_operand.hbm [shape: f32[4,2,128], index: 5, kind: output, shape index: {}]
  %s6 = sld [smem:[#allocation0]]
  $region57: #{tpu_custom_call.1} parent=0
    _
  %s8 = ssub.s32 1, %s6
  %s9 = scalar_select 0, %s8, %s6
  $region1: #{tpu_custom_call.1} parent=0
    #allocation2 [shape = 'u8[69632]{0}', space=vmem, size = 0x11000, scoped, tag = 'input window, operand 3, single buffered']
    #allocation3 [shape = 's32[2]{0}', space=sflag, size = 0x8, scoped, tag = 'scoped memory for tpu_custom_call.1']
    #allocation4 [shape = 's32[2]{0}', space=sflag, size = 0x8, scoped, tag = 'scoped memory for tpu_custom_call.1']
    #allocation5 [shape = 'u8[2048]{0}', space=vmem, size = 0x800, scoped, tag = 'output window, operand 0']
    %10 = vsyncpa [#allocation3], 0
    %11 = vsyncpa [#allocation4], 0
    %s12 = scalar_lea.sflag [#allocation4], 1
    %13 = vsyncpa %s12, 0
    loop: start=0, step=1, limit=6
    $region2: #{tpu_custom_call.1} parent=1 // loop_pre_header
      _
    $region3: #{tpu_custom_call.1} parent=1 // loop_header
      %s15 = sphi 0, %s19
      %p16 = scmp.ge.s32.totalorder %s15, 6
      %s25 = sphi 0, %s27
      %s28 = sphi 0, %s25
      %s29 = sphi 0, %s28
      %s45 = sphi 0, %s29
      %s51 = sphi 0, %s53
      %s54 = sphi 0, %s51
      %s55 = sphi 0, %s54
      %s71 = sphi 0, %s55
      %s77 = sphi 0, %s79
      %s80 = sphi 0, %s77
      %s81 = sphi 0, %s80
      %s97 = sphi 0, %s81
      %s101 = sphi 0, %s101
      %s103 = sphi 0, %s101
      %s104 = sphi 0, %s103
      %s118 = sphi 0, %s104
      %s122 = sphi 0, %s122
      %s124 = sphi 0, %s122
      %s125 = sphi 0, %s124
      %s139 = sphi 0, %s125
      %s145 = sphi 0, %s147
      %s148 = sphi 0, %s145
      %s149 = sphi 0, %s148
      %s165 = sphi 0, %s149
    $region4: #{tpu_custom_call.1} parent=1 // loop_header_branch
      %18 = sbr.rel (%p16) target = $region8
    $region5: #{tpu_custom_call.1} parent=1 // loop_body
      %s20 = ssub.s32 %s15, 1
      %s21 = ssub.s32 %s15, 2
      %s22 = sadd.s32 %s15, 1
      %s23 = ssub.s32 %s15, %s22
      %p24 = scmp.eq.s32.totalorder %s23, 0
      %s26 = sadd.s32 %s25, 1
      %s27 = scalar_select %p24, %s25, %s26
      %p30 = pneg %p24
      %p31 = scmp.eq.s32.totalorder %s15, 3
      %p32 = por %p30, %p31
      %p33 = scmp.ne.s32.totalorder %s25, %s28
      %p34 = scmp.eq.s32.totalorder %s15, 0
      %p35 = por %p33, %p34
      %p36 = scmp.ne.s32.totalorder %s25, %s28
      %p37 = scmp.eq.s32.totalorder %s20, 3
      %p38 = por %p36, %p37
      %p39 = scmp.ne.s32.totalorder %s28, %s29
      %p40 = scmp.eq.s32.totalorder %s20, 0
      %p41 = por %p39, %p40
      %p42 = scmp.ne.s32.totalorder %s28, %s29
      %p43 = scmp.eq.s32.totalorder %s21, 3
      %p44 = por %p42, %p43
      %p46 = scmp.ne.s32.totalorder %s29, %s45
      %p47 = scmp.eq.s32.totalorder %s21, 0
      %p48 = por %p46, %p47
      %s49 = ssub.s32 %s15, %s22
      %p50 = scmp.eq.s32.totalorder %s49, 0
      %s52 = sadd.s32 %s51, 1
      %s53 = scalar_select %p50, %s51, %s52
      %p56 = pneg %p50
      %p57 = scmp.eq.s32.totalorder %s15, 3
      %p58 = por %p56, %p57
      %p59 = scmp.ne.s32.totalorder %s51, %s54
      %p60 = scmp.eq.s32.totalorder %s15, 0
      %p61 = por %p59, %p60
      %p62 = scmp.ne.s32.totalorder %s51, %s54
      %p63 = scmp.eq.s32.totalorder %s20, 3
      %p64 = por %p62, %p63
      %p65 = scmp.ne.s32.totalorder %s54, %s55
      %p66 = scmp.eq.s32.totalorder %s20, 0
      %p67 = por %p65, %p66
      %p68 = scmp.ne.s32.totalorder %s54, %s55
      %p69 = scmp.eq.s32.totalorder %s21, 3
      %p70 = por %p68, %p69
      %p72 = scmp.ne.s32.totalorder %s55, %s71
      %p73 = scmp.eq.s32.totalorder %s21, 0
      %p74 = por %p72, %p73
      %s75 = ssub.s32 %s15, %s22
      %p76 = scmp.eq.s32.totalorder %s75, 0
      %s78 = sadd.s32 %s77, 1
      %s79 = scalar_select %p76, %s77, %s78
      %p82 = pneg %p76
      %p83 = scmp.eq.s32.totalorder %s15, 3
      %p84 = por %p82, %p83
      %p85 = scmp.ne.s32.totalorder %s77, %s80
      %p86 = scmp.eq.s32.totalorder %s15, 0
      %p87 = por %p85, %p86
      %p88 = scmp.ne.s32.totalorder %s77, %s80
      %p89 = scmp.eq.s32.totalorder %s20, 3
      %p90 = por %p88, %p89
      %p91 = scmp.ne.s32.totalorder %s80, %s81
      %p92 = scmp.eq.s32.totalorder %s20, 0
      %p93 = por %p91, %p92
      %p94 = scmp.ne.s32.totalorder %s80, %s81
      %p95 = scmp.eq.s32.totalorder %s21, 3
      %p96 = por %p94, %p95
      %p98 = scmp.ne.s32.totalorder %s81, %s97
      %p99 = scmp.eq.s32.totalorder %s21, 0
      %p100 = por %p98, %p99
      %s102 = sadd.s32 %s101, 1
      %p105 = scmp.eq.s32.totalorder %s15, 3
      %p106 = scmp.ne.s32.totalorder %s101, %s103
      %p107 = scmp.eq.s32.totalorder %s15, 0
      %p108 = por %p106, %p107
      %p109 = scmp.ne.s32.totalorder %s101, %s103
      %p110 = scmp.eq.s32.totalorder %s20, 3
      %p111 = por %p109, %p110
      %p112 = scmp.ne.s32.totalorder %s103, %s104
      %p113 = scmp.eq.s32.totalorder %s20, 0
      %p114 = por %p112, %p113
      %p115 = scmp.ne.s32.totalorder %s103, %s104
      %p116 = scmp.eq.s32.totalorder %s21, 3
      %p117 = por %p115, %p116
      %p119 = scmp.ne.s32.totalorder %s104, %s118
      %p120 = scmp.eq.s32.totalorder %s21, 0
      %p121 = por %p119, %p120
      %s123 = sadd.s32 %s122, 1
      %p126 = scmp.eq.s32.totalorder %s15, 3
      %p127 = scmp.ne.s32.totalorder %s122, %s124
      %p128 = scmp.eq.s32.totalorder %s15, 0
      %p129 = por %p127, %p128
      %p130 = scmp.ne.s32.totalorder %s122, %s124
      %p131 = scmp.eq.s32.totalorder %s20, 3
      %p132 = por %p130, %p131
      %p133 = scmp.ne.s32.totalorder %s124, %s125
      %p134 = scmp.eq.s32.totalorder %s20, 0
      %p135 = por %p133, %p134
      %p136 = scmp.ne.s32.totalorder %s124, %s125
      %p137 = scmp.eq.s32.totalorder %s21, 3
      %p138 = por %p136, %p137
      %p140 = scmp.ne.s32.totalorder %s125, %s139
      %p141 = scmp.eq.s32.totalorder %s21, 0
      %p142 = por %p140, %p141
      %s143 = ssub.s32 %s15, %s22
      %p144 = scmp.eq.s32.totalorder %s143, 0
      %s146 = sadd.s32 %s145, 1
      %s147 = scalar_select %p144, %s145, %s146
      %p150 = pneg %p144
      %p151 = scmp.eq.s32.totalorder %s15, 3
      %p152 = por %p150, %p151
      %p153 = scmp.ne.s32.totalorder %s145, %s148
      %p154 = scmp.eq.s32.totalorder %s15, 0
      %p155 = por %p153, %p154
      %p156 = scmp.ne.s32.totalorder %s145, %s148
      %p157 = scmp.eq.s32.totalorder %s20, 3
      %p158 = por %p156, %p157
      %p159 = scmp.ne.s32.totalorder %s148, %s149
      %p160 = scmp.eq.s32.totalorder %s20, 0
      %p161 = por %p159, %p160
      %p162 = scmp.ne.s32.totalorder %s148, %s149
      %p163 = scmp.eq.s32.totalorder %s21, 3
      %p164 = por %p162, %p163
      %p166 = scmp.ne.s32.totalorder %s149, %s165
      %p167 = scmp.eq.s32.totalorder %s21, 0
      %p168 = por %p166, %p167
      %p169 = scmp.le.s32.totalorder 1, %s15
      %p170 = scmp.lt.s32.totalorder %s15, 5
      %p171 = pnand %p169, %p170
      %p172 = pneg %p171
      // Predicated region
      $region9: #{tpu_custom_call.1} parent=5 // pred_check
        _
      $region10: #{tpu_custom_call.1} parent=5 // pred_check_branch
        %174 = sbr.rel (%p171) target = $region12
      $region11: #{tpu_custom_call.1} parent=5 // pred_region
        %s175 = ssub.s32 %s15, 1
        // Predicated region
        $region13: #{tpu_custom_call.1} parent=11 // pred_check
          %p176 = pneg %p114
        $region14: #{tpu_custom_call.1} parent=11 // pred_check_branch
          %178 = sbr.rel (%p176) target = $region16
        $region15: #{tpu_custom_call.1} parent=11 // pred_region
          %s180 = ssub.s32 2176, 2176
          %181 = vsyncadd [#allocation3], %s180
          %s182 = sshll.u32 [#allocation2], 4
          %s183 = int_to_ptr.vmem [resolvable:$true] %s182
          %188 = dma.hbm_to_vmem [thread:$0]  %s3, 2176, %s183, [#allocation3], 64, 64, 4
        $region16: #{tpu_custom_call.1} parent=11 // pred_fallthru
          _
        // Predicated region
        $region17: #{tpu_custom_call.1} parent=11 // pred_check
          %p189 = pneg %p135
        $region18: #{tpu_custom_call.1} parent=11 // pred_check_branch
          %191 = sbr.rel (%p189) target = $region20
        $region19: #{tpu_custom_call.1} parent=11 // pred_region
          _
        $region20: #{tpu_custom_call.1} parent=11 // pred_fallthru
          _
      $region12: #{tpu_custom_call.1} parent=5 // pred_fallthru
        _
      %p192 = scmp.lt.s32.totalorder %s15, 4
      // Predicated region
      $region21: #{tpu_custom_call.1} parent=5 // pred_check
        %p193 = pneg %p192
      $region22: #{tpu_custom_call.1} parent=5 // pred_check_branch
        %195 = sbr.rel (%p193) target = $region24
      $region23: #{tpu_custom_call.1} parent=5 // pred_region
        // Predicated region
        $region25: #{tpu_custom_call.1} parent=23 // pred_check
          %p196 = pneg %p35
        $region26: #{tpu_custom_call.1} parent=23 // pred_check_branch
          %198 = sbr.rel (%p196) target = $region28
        $region27: #{tpu_custom_call.1} parent=23 // pred_region
          %p199 = scmp.lt.s32.totalorder %s15, 3
          %s200 = scalar_select %p199, %s15, 3
          %s201 = smul.addr %s200, 4
          %s202 = smul.addr %s201, 4
          %s203 = scalar_lea.vmem %s0, %s202
        $region28: #{tpu_custom_call.1} parent=23 // pred_fallthru
          _
        // Predicated region
        $region29: #{tpu_custom_call.1} parent=23 // pred_check
          %p204 = pneg %p61
        $region30: #{tpu_custom_call.1} parent=23 // pred_check_branch
          %206 = sbr.rel (%p204) target = $region32
        $region31: #{tpu_custom_call.1} parent=23 // pred_region
          %p207 = scmp.lt.s32.totalorder %s15, 3
          %s208 = scalar_select %p207, %s15, 3
          %s209 = smul.addr %s208, 4
          %s210 = smul.addr %s209, 4
          %s211 = scalar_lea.vmem %s1, %s210
        $region32: #{tpu_custom_call.1} parent=23 // pred_fallthru
          _
        // Predicated region
        $region33: #{tpu_custom_call.1} parent=23 // pred_check
          %p212 = pneg %p87
        $region34: #{tpu_custom_call.1} parent=23 // pred_check_branch
          %214 = sbr.rel (%p212) target = $region36
        $region35: #{tpu_custom_call.1} parent=23 // pred_region
          %p215 = scmp.lt.s32.totalorder %s15, 3
          %s216 = scalar_select %p215, %s15, 3
          %s217 = scalar_lea.vmem %s2, %s216
        $region36: #{tpu_custom_call.1} parent=23 // pred_fallthru
          _
      $region24: #{tpu_custom_call.1} parent=5 // pred_fallthru
        _
      %p218 = scmp.le.s32.totalorder 1, %s15
      %p219 = scmp.lt.s32.totalorder %s15, 5
      %p220 = pnand %p218, %p219
      %p221 = pneg %p220
      // Predicated region
      $region37: #{tpu_custom_call.1} parent=5 // pred_check
        _
      $region38: #{tpu_custom_call.1} parent=5 // pred_check_branch
        %223 = sbr.rel (%p220) target = $region40
      $region39: #{tpu_custom_call.1} parent=5 // pred_region
        %s224 = ssub.s32 %s15, 1
        // Predicated region
        $region41: #{tpu_custom_call.1} parent=39 // pred_check
          %p225 = pneg %p114
        $region42: #{tpu_custom_call.1} parent=39 // pred_check_branch
          %227 = sbr.rel (%p225) target = $region44
        $region43: #{tpu_custom_call.1} parent=39 // pred_region
          %228 = dma.done [#allocation3], 2176
        $region44: #{tpu_custom_call.1} parent=39 // pred_fallthru
          _
        %p229 = scmp.lt.s32.totalorder %s20, 3
        %s230 = scalar_select %p229, %s20, 3
        %s231 = smul.addr %s230, 4
        %s232 = smul.addr %s231, 4
        %s233 = scalar_lea.vmem %s0, %s232
        %p234 = pneg %p41
        %p235 = pneg %p38
        %p236 = scmp.lt.s32.totalorder %s20, 3
        %s237 = scalar_select %p236, %s20, 3
        %s238 = smul.addr %s237, 4
        %s239 = smul.addr %s238, 4
        %s240 = scalar_lea.vmem %s1, %s239
        %p241 = pneg %p67
        %p242 = pneg %p64
        %p243 = scmp.lt.s32.totalorder %s20, 3
        %s244 = scalar_select %p243, %s20, 3
        %s245 = scalar_lea.vmem %s2, %s244
        %p246 = pneg %p93
        %p247 = pneg %p90
        %p248 = pneg %p114
        %p249 = pneg %p111
        %p250 = pneg %p135
        %p251 = pneg %p132
        %p252 = pneg %p161
        %p253 = pneg %p158
        %s254 = sand.u32 %s148, 1
        %s255 = scalar_lea.sflag [#allocation4], %s254
        %s256 = sand.u32 %s148, 1
        %s257 = smul.addr %s256, 2
        %s258 = scalar_lea.vmem [#allocation5], %s257
        %p259 = scmp.lt.s32.totalorder %s20, 3
        %s260 = scalar_select %p259, %s20, 3
        %s261 = smul.addr %s260, 4
        %s262 = smul.addr %s261, 4
        %s263 = scalar_lea.vmem %s0, %s262
        %p264 = scmp.lt.s32.totalorder %s20, 3
        %s265 = scalar_select %p264, %s20, 3
        %s266 = smul.addr %s265, 4
        %s267 = smul.addr %s266, 4
        %s268 = scalar_lea.vmem %s1, %s267
        %p269 = scmp.lt.s32.totalorder %s20, 3
        %s270 = scalar_select %p269, %s20, 3
        %s271 = scalar_lea.vmem %s2, %s270
        %v273 = vld [vmem:[%s263] sm:$0xf]
        %v274 = vld [vmem:[%s263 + $0x4] sm:$0xf]
        %v275 = vld [vmem:[%s263 + $0x8] sm:$0xf]
        %v276 = vld [vmem:[%s263 + $0xc] sm:$0xf]
        %v277 = vld [vmem:[%s268] sm:$0xf]
        %v278 = vld [vmem:[%s268 + $0x4] sm:$0xf]
        %v279 = vld [vmem:[%s268 + $0x8] sm:$0xf]
        %v280 = vld [vmem:[%s268 + $0xc] sm:$0xf]
        %v281 = vld [vmem:[%s271] sm:$0x1]
        %v282 = vld [vmem:[#allocation2] sm:$0xf]
        %v283 = vld [vmem:[#allocation2 + $0x4] sm:$0xf]
        %v284 = vld [vmem:[#allocation2 + $0x8] sm:$0xf]
        %v285 = vld [vmem:[#allocation2 + $0xc] sm:$0xf]
        %v286 = vld [vmem:[#allocation2 + $0x10] sm:$0xf]
        %v287 = vld [vmem:[#allocation2 + $0x14] sm:$0xf]
        %v288 = vld [vmem:[#allocation2 + $0x18] sm:$0xf]
        %v289 = vld [vmem:[#allocation2 + $0x1c] sm:$0xf]
        %v290 = vld [vmem:[#allocation2 + $0x20] sm:$0xf]
        %v291 = vld [vmem:[#allocation2 + $0x24] sm:$0xf]
        %v292 = vld [vmem:[#allocation2 + $0x28] sm:$0xf]
        %v293 = vld [vmem:[#allocation2 + $0x2c] sm:$0xf]
        %v294 = vld [vmem:[#allocation2 + $0x30] sm:$0xf]
        %v295 = vld [vmem:[#allocation2 + $0x34] sm:$0xf]
        %v296 = vld [vmem:[#allocation2 + $0x38] sm:$0xf]
        %v297 = vld [vmem:[#allocation2 + $0x3c] sm:$0xf]
        %v298 = vld [vmem:[#allocation2 + $0x40] sm:$0xf]
        %v299 = vld [vmem:[#allocation2 + $0x44] sm:$0xf]
        %v300 = vld [vmem:[#allocation2 + $0x48] sm:$0xf]
        %v301 = vld [vmem:[#allocation2 + $0x4c] sm:$0xf]
        %v302 = vld [vmem:[#allocation2 + $0x50] sm:$0xf]
        %v303 = vld [vmem:[#allocation2 + $0x54] sm:$0xf]
        %v304 = vld [vmem:[#allocation2 + $0x58] sm:$0xf]
        %v305 = vld [vmem:[#allocation2 + $0x5c] sm:$0xf]
        %v306 = vld [vmem:[#allocation2 + $0x60] sm:$0xf]
        %v307 = vld [vmem:[#allocation2 + $0x64] sm:$0xf]
        %v308 = vld [vmem:[#allocation2 + $0x68] sm:$0xf]
        %v309 = vld [vmem:[#allocation2 + $0x6c] sm:$0xf]
        %v310 = vld [vmem:[#allocation2 + $0x70] sm:$0xf]
        %v311 = vld [vmem:[#allocation2 + $0x74] sm:$0xf]
        %v312 = vld [vmem:[#allocation2 + $0x78] sm:$0xf]
        %v313 = vld [vmem:[#allocation2 + $0x7c] sm:$0xf]
        %v314 = vld [vmem:[#allocation2 + $0x80] sm:$0xf]
        %v315 = vld [vmem:[#allocation2 + $0x84] sm:$0xf]
        %v316 = vld [vmem:[%s4] sm:$0x1]
        %v317 = vld [vmem:[%s4 + $0x1] sm:$0x1]
        %v318 = vld [vmem:[%s4 + $0x2] sm:$0x1]
        %v323 = vunpack.c.l.b16 %v273
        %v324 = vunpack.c.l.b16 %v274
        %v325 = vunpack.c.l.b16 %v275
        %v326 = vunpack.c.l.b16 %v276
        %v327 = vpack.c.b16 %v324, %v323
        %v328 = vpack.c.b16 %v326, %v325
        %v331 = vunpack.c.l.b16 %v282
        %v332 = vunpack.c.l.b16 %v283
        %v333 = vpack.c.b16 %v332, %v331
        %vm335 = vcmask 130048
        %v337 = vsel %vm335, %v327, 0
        %v340 = vsel %vm335, %v328, 0
        %342 = vmatprep.subr.bf16.mxu0 0
        %343 = vmatpush1.bf16.msra.mxu0 %v333
        %344 = vmatprep.subr.bf16.mxu0 0
        %345 = vmatpush1.bf16.msra.mxu0 0
        %346 = vmatprep.subr.bf16.mxu0 0
        %347 = vmatpush1.bf16.msra.mxu0 0
        %348 = vmatprep.subr.bf16.mxu0 0
        %349 = vmatpush1.bf16.msra.mxu0 0
        %350 = vmatprep.subr.bf16.mxu0 0
        %351 = vmatpush1.bf16.msra.mxu0 0
        %352 = vmatprep.subr.bf16.mxu0 0
        %353 = vmatpush1.bf16.msra.mxu0 0
        %354 = vmatprep.subr.bf16.mxu0 0
        %355 = vmatpush1.bf16.msra.mxu0 0
        %356 = vmatprep.subr.bf16.mxu0 0
        %357 = vmatpush1.bf16.msra.mxu0 0
        %358 = vmatprep.subr.bf16.mxu0 0
        %359 = vmatpush1.bf16.msra.mxu0 0
        %360 = vmatprep.subr.bf16.mxu0 0
        %361 = vmatpush1.bf16.msra.mxu0 0
        %362 = vmatprep.subr.bf16.mxu0 0
        %363 = vmatpush1.bf16.msra.mxu0 0
        %364 = vmatprep.subr.bf16.mxu0 0
        %365 = vmatpush1.bf16.msra.mxu0 0
        %366 = vmatprep.subr.bf16.mxu0 0
        %367 = vmatpush1.bf16.msra.mxu0 0
        %368 = vmatprep.subr.bf16.mxu0 0
        %369 = vmatpush1.bf16.msra.mxu0 0
        %370 = vmatprep.subr.bf16.mxu0 0
        %371 = vmatpush1.bf16.msra.mxu0 0
        %372 = vmatprep.subr.bf16.mxu0 0
        %373 = vmatpush1.bf16.msra.mxu0 0
        %374 = vmatprep.mubr.bf16.mxu0 0
        %375 = vmatmul.mubr.bf16.gmra.mrb[0].mxu0 %v337
        %v376 = vpop.f32.mrb[0].mxu0
        %v377 = vadd.f32 0.0, %v376
        %v378 = vpop.f32.mrb[0].mxu0
        %v379 = vpop.f32.mrb[0].mxu0
        %v380 = vadd.f32 0.0, %v379
        %v381 = vpop.f32.mrb[0].mxu0
        %382 = vmatprep.mubr.bf16.mxu0 0
        %383 = vmatmul.mubr.bf16.gmra.mrb[0].mxu0 %v340
        %v384 = vpop.f32.mrb[0].mxu0
        %v385 = vadd.f32 0.0, %v384
        %v386 = vpop.f32.mrb[0].mxu0
        %v387 = vpop.f32.mrb[0].mxu0
        %v388 = vadd.f32 0.0, %v387
        %v389 = vpop.f32.mrb[0].mxu0
        %390 = vdwg.mxu0
        %v391 = vpack.c.bf16 %v380, %v377
        %v392 = vpack.c.bf16 %v388, %v385
        %v393 = vlaneseq
        %v394 = vshrl.u32 %v393, 7
        %v395 = vsub.s32 0, %v394
        %v396 = vrot.slane %v316, %v395
        %v401 = vunpack.c.l.b16 %v277
        %v402 = vunpack.c.l.b16 %v278
        %v403 = vunpack.c.l.b16 %v279
        %v404 = vunpack.c.l.b16 %v280
        %v405 = vpack.c.b16 %v402, %v401
        %v406 = vpack.c.b16 %v404, %v403
        %vm407 = vcmask 261120
        %v409 = vsel %vm407, %v405, 0
        %v412 = vsel %vm407, %v406, 0
        %414 = vmatprep.subr.bf16.mxu0 0
        %415 = vmatpush1.bf16.msra.mxu0 %v391
        %416 = vmatprep.subr.bf16.mxu0 0
        %417 = vmatpush1.bf16.msra.mxu0 %v392
        %418 = vmatprep.subr.bf16.mxu0 0
        %419 = vmatpush1.bf16.msra.mxu0 0
        %420 = vmatprep.subr.bf16.mxu0 0
        %421 = vmatpush1.bf16.msra.mxu0 0
        %422 = vmatprep.subr.bf16.mxu0 0
        %423 = vmatpush1.bf16.msra.mxu0 0
        %424 = vmatprep.subr.bf16.mxu0 0
        %425 = vmatpush1.bf16.msra.mxu0 0
        %426 = vmatprep.subr.bf16.mxu0 0
        %427 = vmatpush1.bf16.msra.mxu0 0
        %428 = vmatprep.subr.bf16.mxu0 0
        %429 = vmatpush1.bf16.msra.mxu0 0
        %430 = vmatprep.subr.bf16.mxu0 0
        %431 = vmatpush1.bf16.msra.mxu0 0
        %432 = vmatprep.subr.bf16.mxu0 0
        %433 = vmatpush1.bf16.msra.mxu0 0
        %434 = vmatprep.subr.bf16.mxu0 0
        %435 = vmatpush1.bf16.msra.mxu0 0
        %436 = vmatprep.subr.bf16.mxu0 0
        %437 = vmatpush1.bf16.msra.mxu0 0
        %438 = vmatprep.subr.bf16.mxu0 0
        %439 = vmatpush1.bf16.msra.mxu0 0
        %440 = vmatprep.subr.bf16.mxu0 0
        %441 = vmatpush1.bf16.msra.mxu0 0
        %442 = vmatprep.subr.bf16.mxu0 0
        %443 = vmatpush1.bf16.msra.mxu0 0
        %444 = vmatprep.subr.bf16.mxu0 0
        %445 = vmatpush1.bf16.msra.mxu0 0
        %446 = vmatprep.mubr.bf16.mxu0 0
        %447 = vmatmul.mubr.bf16.gmra.mrb[0].mxu0 %v409
        %v448 = vpop.f32.mrb[0].mxu0
        %v449 = vadd.f32 %v396, %v448
        %v450 = vpop.f32.mrb[0].mxu0
        %v451 = vpop.f32.mrb[0].mxu0
        %v452 = vadd.f32 %v396, %v451
        %v453 = vpop.f32.mrb[0].mxu0
        %454 = vmatprep.mubr.bf16.mxu0 0
        %455 = vmatmul.mubr.bf16.gmra.mrb[0].mxu0 %v412
        %v456 = vpop.f32.mrb[0].mxu0
        %v457 = vadd.f32 %v396, %v456
        %v458 = vpop.f32.mrb[0].mxu0
        %v459 = vpop.f32.mrb[0].mxu0
        %v460 = vadd.f32 %v396, %v459
        %v461 = vpop.f32.mrb[0].mxu0
        %462 = vdwg.mxu0
        %v463 = vmax.f32 %v449, 0.0
        %v464 = vmax.f32 %v452, 0.0
        %v465 = vmax.f32 %v457, 0.0
        %v466 = vmax.f32 %v460, 0.0
        %v467 = vpack.c.bf16 %v464, %v463
        %v468 = vpack.c.bf16 %v466, %v465
        %v485 = vunpack.c.l.b16 %v284
        %v486 = vunpack.c.l.b16 %v285
        %v487 = vunpack.c.l.b16 %v286
        %v488 = vunpack.c.l.b16 %v287
        %v489 = vunpack.c.l.b16 %v288
        %v490 = vunpack.c.l.b16 %v289
        %v491 = vunpack.c.l.b16 %v290
        %v492 = vunpack.c.l.b16 %v291
        %v493 = vunpack.c.l.b16 %v292
        %v494 = vunpack.c.l.b16 %v293
        %v495 = vunpack.c.l.b16 %v294
        %v496 = vunpack.c.l.b16 %v295
        %v497 = vunpack.c.l.b16 %v296
        %v498 = vunpack.c.l.b16 %v297
        %v499 = vunpack.c.l.b16 %v298
        %v500 = vunpack.c.l.b16 %v299
        %v501 = vpack.c.b16 %v486, %v485
        %v502 = vpack.c.b16 %v488, %v487
        %v503 = vpack.c.b16 %v490, %v489
        %v504 = vpack.c.b16 %v492, %v491
        %v505 = vpack.c.b16 %v494, %v493
        %v506 = vpack.c.b16 %v496, %v495
        %v507 = vpack.c.b16 %v498, %v497
        %v508 = vpack.c.b16 %v500, %v499
        %517 = vmatprep.subr.bf16.mxu0 0
        %518 = vmatpush1.bf16.msra.mxu0 %v501
        %519 = vmatprep.subr.bf16.mxu0 0
        %520 = vmatpush1.bf16.msra.mxu0 %v502
        %521 = vmatprep.subr.bf16.mxu0 0
        %522 = vmatpush1.bf16.msra.mxu0 %v503
        %523 = vmatprep.subr.bf16.mxu0 0
        %524 = vmatpush1.bf16.msra.mxu0 %v504
        %525 = vmatprep.subr.bf16.mxu0 0
        %526 = vmatpush1.bf16.msra.mxu0 %v505
        %527 = vmatprep.subr.bf16.mxu0 0
        %528 = vmatpush1.bf16.msra.mxu0 %v506
        %529 = vmatprep.subr.bf16.mxu0 0
        %530 = vmatpush1.bf16.msra.mxu0 %v507
        %531 = vmatprep.subr.bf16.mxu0 0
        %532 = vmatpush1.bf16.msra.mxu0 %v508
        %533 = vmatprep.subr.bf16.mxu0 0
        %534 = vmatpush1.bf16.msra.mxu0 0
        %535 = vmatprep.subr.bf16.mxu0 0
        %536 = vmatpush1.bf16.msra.mxu0 0
        %537 = vmatprep.subr.bf16.mxu0 0
        %538 = vmatpush1.bf16.msra.mxu0 0
        %539 = vmatprep.subr.bf16.mxu0 0
        %540 = vmatpush1.bf16.msra.mxu0 0
        %541 = vmatprep.subr.bf16.mxu0 0
        %542 = vmatpush1.bf16.msra.mxu0 0
        %543 = vmatprep.subr.bf16.mxu0 0
        %544 = vmatpush1.bf16.msra.mxu0 0
        %545 = vmatprep.subr.bf16.mxu0 0
        %546 = vmatpush1.bf16.msra.mxu0 0
        %547 = vmatprep.subr.bf16.mxu0 0
        %548 = vmatpush1.bf16.msra.mxu0 0
        %549 = vmatprep.mubr.bf16.mxu0 0
        %550 = vmatmul.mubr.bf16.gmra.mrb[0].mxu0 %v467
        %v551 = vpop.f32.mrb[0].mxu0
        %v552 = vadd.f32 0.0, %v551
        %v553 = vpop.f32.mrb[0].mxu0
        %v554 = vpop.f32.mrb[0].mxu0
        %v555 = vadd.f32 0.0, %v554
        %v556 = vpop.f32.mrb[0].mxu0
        %557 = vmatprep.mubr.bf16.mxu0 0
        %558 = vmatmul.mubr.bf16.gmra.mrb[0].mxu0 %v468
        %v559 = vpop.f32.mrb[0].mxu0
        %v560 = vadd.f32 0.0, %v559
        %v561 = vpop.f32.mrb[0].mxu0
        %v562 = vpop.f32.mrb[0].mxu0
        %v563 = vadd.f32 0.0, %v562
        %v564 = vpop.f32.mrb[0].mxu0
        %565 = vdwg.mxu0
        %v566 = vpack.c.bf16 %v555, %v552
        %v567 = vpack.c.bf16 %v563, %v560
        %v568 = vlaneseq
        %v569 = vshrl.u32 %v568, 7
        %v570 = vsub.s32 0, %v569
        %v571 = vrot.slane %v317, %v570
        %572 = vmatprep.subr.bf16.mxu0 0
        %573 = vmatpush1.bf16.msra.mxu0 %v566
        %574 = vmatprep.subr.bf16.mxu0 0
        %575 = vmatpush1.bf16.msra.mxu0 %v567
        %576 = vmatprep.subr.bf16.mxu0 0
        %577 = vmatpush1.bf16.msra.mxu0 0
        %578 = vmatprep.subr.bf16.mxu0 0
        %579 = vmatpush1.bf16.msra.mxu0 0
        %580 = vmatprep.subr.bf16.mxu0 0
        %581 = vmatpush1.bf16.msra.mxu0 0
        %582 = vmatprep.subr.bf16.mxu0 0
        %583 = vmatpush1.bf16.msra.mxu0 0
        %584 = vmatprep.subr.bf16.mxu0 0
        %585 = vmatpush1.bf16.msra.mxu0 0
        %586 = vmatprep.subr.bf16.mxu0 0
        %587 = vmatpush1.bf16.msra.mxu0 0
        %588 = vmatprep.subr.bf16.mxu0 0
        %589 = vmatpush1.bf16.msra.mxu0 0
        %590 = vmatprep.subr.bf16.mxu0 0
        %591 = vmatpush1.bf16.msra.mxu0 0
        %592 = vmatprep.subr.bf16.mxu0 0
        %593 = vmatpush1.bf16.msra.mxu0 0
        %594 = vmatprep.subr.bf16.mxu0 0
        %595 = vmatpush1.bf16.msra.mxu0 0
        %596 = vmatprep.subr.bf16.mxu0 0
        %597 = vmatpush1.bf16.msra.mxu0 0
        %598 = vmatprep.subr.bf16.mxu0 0
        %599 = vmatpush1.bf16.msra.mxu0 0
        %600 = vmatprep.subr.bf16.mxu0 0
        %601 = vmatpush1.bf16.msra.mxu0 0
        %602 = vmatprep.subr.bf16.mxu0 0
        %603 = vmatpush1.bf16.msra.mxu0 0
        %604 = vmatprep.mubr.bf16.mxu0 0
        %605 = vmatmul.mubr.bf16.gmra.mrb[0].mxu0 %v409
        %v606 = vpop.f32.mrb[0].mxu0
        %v607 = vadd.f32 %v571, %v606
        %v608 = vpop.f32.mrb[0].mxu0
        %v609 = vpop.f32.mrb[0].mxu0
        %v610 = vadd.f32 %v571, %v609
        %v611 = vpop.f32.mrb[0].mxu0
        %612 = vmatprep.mubr.bf16.mxu0 0
        %613 = vmatmul.mubr.bf16.gmra.mrb[0].mxu0 %v412
        %v614 = vpop.f32.mrb[0].mxu0
        %v615 = vadd.f32 %v571, %v614
        %v616 = vpop.f32.mrb[0].mxu0
        %v617 = vpop.f32.mrb[0].mxu0
        %v618 = vadd.f32 %v571, %v617
        %v619 = vpop.f32.mrb[0].mxu0
        %620 = vdwg.mxu0
        %v621 = vmax.f32 %v607, 0.0
        %v622 = vmax.f32 %v610, 0.0
        %v623 = vmax.f32 %v615, 0.0
        %v624 = vmax.f32 %v618, 0.0
        %v625 = vpack.c.bf16 %v622, %v621
        %v626 = vpack.c.bf16 %v624, %v623
        %v628 = vsel %vm407, %v281, 0
        %630 = vmatprep.subr.bf16.mxu0 0
        %631 = vmatpush1.bf16.msra.mxu0 %v625
        %632 = vmatprep.subr.bf16.mxu0 0
        %633 = vmatpush1.bf16.msra.mxu0 %v626
        %634 = vmatprep.subr.bf16.mxu0 0
        %635 = vmatpush1.bf16.msra.mxu0 0
        %636 = vmatprep.subr.bf16.mxu0 0
        %637 = vmatpush1.bf16.msra.mxu0 0
        %638 = vmatprep.subr.bf16.mxu0 0
        %639 = vmatpush1.bf16.msra.mxu0 0
        %640 = vmatprep.subr.bf16.mxu0 0
        %641 = vmatpush1.bf16.msra.mxu0 0
        %642 = vmatprep.subr.bf16.mxu0 0
        %643 = vmatpush1.bf16.msra.mxu0 0
        %644 = vmatprep.subr.bf16.mxu0 0
        %645 = vmatpush1.bf16.msra.mxu0 0
        %646 = vmatprep.subr.bf16.mxu0 0
        %647 = vmatpush1.bf16.msra.mxu0 0
        %648 = vmatprep.subr.bf16.mxu0 0
        %649 = vmatpush1.bf16.msra.mxu0 0
        %650 = vmatprep.subr.bf16.mxu0 0
        %651 = vmatpush1.bf16.msra.mxu0 0
        %652 = vmatprep.subr.bf16.mxu0 0
        %653 = vmatpush1.bf16.msra.mxu0 0
        %654 = vmatprep.subr.bf16.mxu0 0
        %655 = vmatpush1.bf16.msra.mxu0 0
        %656 = vmatprep.subr.bf16.mxu0 0
        %657 = vmatpush1.bf16.msra.mxu0 0
        %658 = vmatprep.subr.bf16.mxu0 0
        %659 = vmatpush1.bf16.msra.mxu0 0
        %660 = vmatprep.subr.bf16.mxu0 0
        %661 = vmatpush1.bf16.msra.mxu0 0
        %662 = vmatprep.mubr.bf16.mxu0 0
        %663 = vmatmul.mubr.bf16.gmra.mrb[0].mxu0 %v628
        %v664 = vpop.f32.mrb[0].mxu0
        %v665 = vadd.f32 0.0, %v664
        %v666 = vpop.f32.mrb[0].mxu0
        %v667 = vpop.f32.mrb[0].mxu0
        %v668 = vpop.f32.mrb[0].mxu0
        %669 = vdwg.mxu0
        %v670 = vpack.c.bf16 %v665, %v665
        %v671 = vlaneseq
        %v672 = vshrl.u32 %v671, 7
        %v673 = vsub.s32 0, %v672
        %v674 = vrot.slane %v318, %v673
        %v691 = vunpack.c.l.b16 %v300
        %v692 = vunpack.c.l.b16 %v301
        %v693 = vunpack.c.l.b16 %v302
        %v694 = vunpack.c.l.b16 %v303
        %v695 = vunpack.c.l.b16 %v304
        %v696 = vunpack.c.l.b16 %v305
        %v697 = vunpack.c.l.b16 %v306
        %v698 = vunpack.c.l.b16 %v307
        %v699 = vunpack.c.l.b16 %v308
        %v700 = vunpack.c.l.b16 %v309
        %v701 = vunpack.c.l.b16 %v310
        %v702 = vunpack.c.l.b16 %v311
        %v703 = vunpack.c.l.b16 %v312
        %v704 = vunpack.c.l.b16 %v313
        %v705 = vunpack.c.l.b16 %v314
        %v706 = vunpack.c.l.b16 %v315
        %v707 = vpack.c.b16 %v692, %v691
        %v708 = vpack.c.b16 %v694, %v693
        %v709 = vpack.c.b16 %v696, %v695
        %v710 = vpack.c.b16 %v698, %v697
        %v711 = vpack.c.b16 %v700, %v699
        %v712 = vpack.c.b16 %v702, %v701
        %v713 = vpack.c.b16 %v704, %v703
        %v714 = vpack.c.b16 %v706, %v705
        %723 = vmatprep.subr.bf16.mxu0 0
        %724 = vmatpush1.bf16.msra.mxu0 %v707
        %725 = vmatprep.subr.bf16.mxu0 0
        %726 = vmatpush1.bf16.msra.mxu0 %v708
        %727 = vmatprep.subr.bf16.mxu0 0
        %728 = vmatpush1.bf16.msra.mxu0 %v709
        %729 = vmatprep.subr.bf16.mxu0 0
        %730 = vmatpush1.bf16.msra.mxu0 %v710
        %731 = vmatprep.subr.bf16.mxu0 0
        %732 = vmatpush1.bf16.msra.mxu0 %v711
        %733 = vmatprep.subr.bf16.mxu0 0
        %734 = vmatpush1.bf16.msra.mxu0 %v712
        %735 = vmatprep.subr.bf16.mxu0 0
        %736 = vmatpush1.bf16.msra.mxu0 %v713
        %737 = vmatprep.subr.bf16.mxu0 0
        %738 = vmatpush1.bf16.msra.mxu0 %v714
        %739 = vmatprep.subr.bf16.mxu0 0
        %740 = vmatpush1.bf16.msra.mxu0 0
        %741 = vmatprep.subr.bf16.mxu0 0
        %742 = vmatpush1.bf16.msra.mxu0 0
        %743 = vmatprep.subr.bf16.mxu0 0
        %744 = vmatpush1.bf16.msra.mxu0 0
        %745 = vmatprep.subr.bf16.mxu0 0
        %746 = vmatpush1.bf16.msra.mxu0 0
        %747 = vmatprep.subr.bf16.mxu0 0
        %748 = vmatpush1.bf16.msra.mxu0 0
        %749 = vmatprep.subr.bf16.mxu0 0
        %750 = vmatpush1.bf16.msra.mxu0 0
        %751 = vmatprep.subr.bf16.mxu0 0
        %752 = vmatpush1.bf16.msra.mxu0 0
        %753 = vmatprep.subr.bf16.mxu0 0
        %754 = vmatpush1.bf16.msra.mxu0 0
        %755 = vmatprep.mubr.bf16.mxu0 0
        %756 = vmatmul.mubr.bf16.gmra.mrb[0].mxu0 %v670
        %v757 = vpop.f32.mrb[0].mxu0
        %v758 = vadd.f32 %v674, %v757
        %v759 = vpop.f32.mrb[0].mxu0
        %v760 = vpop.f32.mrb[0].mxu0
        %v761 = vpop.f32.mrb[0].mxu0
        %762 = vdwg.mxu0
        %763 = vst [vmem:[%s258] sm:$0x3] %v758
        %s764 = sand.u32 %s148, 1
        %s765 = scalar_lea.sflag [#allocation4], %s764
        %s766 = sand.u32 %s148, 1
        %s767 = smul.addr %s766, 2
        %s768 = scalar_lea.vmem [#allocation5], %s767
        // Predicated region
        $region45: #{tpu_custom_call.1} parent=39 // pred_check
          %p769 = pneg %p158
        $region46: #{tpu_custom_call.1} parent=39 // pred_check_branch
          %771 = sbr.rel (%p769) target = $region48
        $region47: #{tpu_custom_call.1} parent=39 // pred_region
          %s773 = ssub.s32 32, 32
          %774 = vsyncadd %s765, %s773
          %s775 = smul.addr %s20, 32
          %s776 = scalar_lea.hbm %s5, %s775
          %s778 = sshll.u32 %s768, 4
          %s779 = int_to_ptr.vmem [resolvable:$true] %s778
          %781 = dma.vmem_to_hbm [thread:$0]  %s779, 32, %s776, %s765
        $region48: #{tpu_custom_call.1} parent=39 // pred_fallthru
          _
      $region40: #{tpu_custom_call.1} parent=5 // pred_fallthru
        _
      %p782 = scmp.le.s32.totalorder 2, %s15
      // Predicated region
      $region49: #{tpu_custom_call.1} parent=5 // pred_check
        %p783 = pneg %p782
      $region50: #{tpu_custom_call.1} parent=5 // pred_check_branch
        %785 = sbr.rel (%p783) target = $region52
      $region51: #{tpu_custom_call.1} parent=5 // pred_region
        %s786 = ssub.s32 %s15, 2
        // Predicated region
        $region53: #{tpu_custom_call.1} parent=51 // pred_check
          %p787 = pneg %p164
        $region54: #{tpu_custom_call.1} parent=51 // pred_check_branch
          %789 = sbr.rel (%p787) target = $region56
        $region55: #{tpu_custom_call.1} parent=51 // pred_region
          %s790 = sand.u32 %s149, 1
          %s791 = scalar_lea.sflag [#allocation4], %s790
          %s792 = sand.u32 %s149, 1
          %s793 = smul.addr %s792, 2
          %s794 = scalar_lea.vmem [#allocation5], %s793
          %795 = dma.done %s791, 32
        $region56: #{tpu_custom_call.1} parent=51 // pred_fallthru
          _
      $region52: #{tpu_custom_call.1} parent=5 // pred_fallthru
        _
    $region6: #{tpu_custom_call.1} parent=1 // loop_footer
      %s19 = sadd.s32 1, %s15
    $region7: #{tpu_custom_call.1} parent=1 // loop_footer_branch
      %14 = sbr.rel target = $region3
    $region8: #{tpu_custom_call.1} parent=1 // loop_exit
      _
    %796 = vsyncpa [#allocation3], 1
    %s797 = scalar_lea.sflag [#allocation3], 1
    %798 = vsyncpa %s797, 1
    %799 = vsyncpa [#allocation4], 1
    %s800 = scalar_lea.sflag [#allocation4], 1
    %801 = vsyncpa %s800, 1

</llo_original>
